<compile_context>
chip_gen: v7x
topology: tpu7x:2x2x1
jax: 0.10.0
libtpu: 0.0.40
codegen_flags: <defaults>
</compile_context>

<pallas_src>
import jax
import jax.numpy as jnp
from jax.experimental import pallas as pl
from jax.experimental.pallas import tpu as pltpu

BN_EPS = 1e-5  # PyTorch BatchNorm2d default


def _transition_kernel(x_ref, scale_ref, shift_ref, w_ref, o_ref):
    # x_ref:     (Nb, 2*Hr, Wo, 2*Cin)  NHWC rows; the two horizontal pooling
    #                                   taps are packed along the lane dim.
    # scale_ref: (1, 2*Cin)  folded BN scale * 0.25, duplicated for both W-taps
    # shift_ref: (1, 2*Cin)  folded BN shift * 0.25, duplicated for both W-taps
    # w_ref:     (2*Cin, Cout)  1x1 conv weight duplicated along K: the MXU
    #                           contraction also sums the two W-taps.
    # o_ref:     (Nb, Hr, Wo, Cout)
    nb, hr, wo, cout = o_ref.shape
    cin2 = x_ref.shape[-1]

    x = x_ref[...].astype(jnp.float32)                       # (Nb, 2Hr, Wo, 2Cin)
    # BatchNorm (inference form) + ReLU, with the 1/4 avgpool factor folded in.
    x = jnp.maximum(x * scale_ref[...] + shift_ref[...], 0.0)

    # Sum the two vertical (H) taps: pure leading-dim split, no data movement.
    xr = x.reshape(nb, hr, 2, wo, cin2)
    s = xr[:, :, 0] + xr[:, :, 1]                             # (Nb, Hr, Wo, 2Cin)

    # One MXU matmul: contracting over 2*Cin sums the two horizontal (W) taps
    # and the channels at once (weight is K-duplicated in the wrapper).
    y = jnp.dot(s.reshape(nb * hr * wo, cin2).astype(w_ref.dtype), w_ref[...],
                preferred_element_type=jnp.float32)           # (M, Cout), f32 acc

    # NOTE: for tiny Cout (toy config) this is a masked vst; real DenseNet
    # transitions have Cout >= 128 so the store is lane-dense.
    o_ref[...] = y.reshape(nb, hr, wo, cout).astype(o_ref.dtype)


def _vmem_budget():
    """(target input-block bytes, vmem_limit_bytes), generation aware."""
    vmem_bytes = 64 * 1024 * 1024          # conservative default (v7x-sized)
    try:
        info = pltpu.get_tpu_info()
        vmem_bytes = int(getattr(info, "vmem_capacity_bytes", vmem_bytes))
    except Exception:
        pass
    if vmem_bytes <= 64 * 1024 * 1024:
        # v7x: 64 MiB VMEM but ~3.2 TB/s HBM -> big blocks to amortize the
        # ~0.35us/step overhead; keep double-buffered footprint well inside.
        return 6 * 1024 * 1024, 48 * 1024 * 1024
    # v5e / v6e: 128 MiB physical VMEM; raise the scoped limit past the
    # 16/32 MiB defaults so double-buffered 6-8 MiB blocks fit.
    return 8 * 1024 * 1024, 96 * 1024 * 1024


def _pick_tiling(N, Ho, row_in_bytes, target_bytes):
    """Pick (Nb, Hr): batch images and pooled output rows per grid step.

    Invariant: either Nb == 1 or Hr == Ho, so blocks stay rectangular and the
    index maps stay trivial.  Works for any spatial size (196, 49, ... -- no
    divisibility-by-8 requirement on the spatial extent)."""
    divs_ho = [d for d in range(Ho, 0, -1) if Ho % d == 0]
    divs_n = [d for d in range(N, 0, -1) if N % d == 0]
    image_bytes = Ho * row_in_bytes

    if image_bytes > target_bytes:
        # Large image: split spatially down to the byte target (this also
        # guarantees >= 2 spatial tiles per image for pipelining / megacore).
        for d in divs_ho:
            if d * row_in_bytes <= target_bytes:
                return 1, d
        return 1, 1

    # Small image: whole images per step; grow along the batch axis but keep
    # >= 2 grid steps overall so the DMA pipeline has something to overlap.
    nb = 1
    for d in divs_n:
        if d * image_bytes <= target_bytes and (N // d >= 2 or N == 1):
            nb = d
            break

    if N // nb == 1 and Ho >= 2:
        # Single-step grid (e.g. N == 1): split spatially instead.
        for d in divs_ho:
            if d < Ho:
                return 1, d
    return nb, Ho


def densenet_transition_block_nhwc(x_nhwc, gamma, beta, run_mean, run_var,
                                   w_oihw, mxu_dtype=None, out_dtype=None):
    """NHWC fast path: zero wrapper-side layout passes.
    x_nhwc: (N, H, W, Cin); returns (N, H//2, W//2, Cout)."""
    N, H, W, Cin = x_nhwc.shape
    assert H % 2 == 0 and W % 2 == 0, "2x2/stride-2 avgpool requires even H, W"
    Cout = w_oihw.shape[0]
    Ho, Wo = H // 2, W // 2

    if out_dtype is None:
        out_dtype = x_nhwc.dtype
    if mxu_dtype is None:
        # bf16 MXU operands only when channels are large enough to matter;
        # keeps the toy config in f32 (matches the f32 reference to 1e-5).
        mxu_dtype = jnp.bfloat16 if min(Cin, Cout) >= 128 else jnp.float32

    # Fold BatchNorm (running-stats / inference form) and the 1/4 pool factor
    # into one scale/shift pair (relu(c*x) = c*relu(x), c > 0), duplicated for
    # the two horizontal pooling taps packed along the lane dim.
    f32 = jnp.float32
    inv = jax.lax.rsqrt(run_var.astype(f32) + BN_EPS)
    scale = 0.25 * gamma.astype(f32) * inv
    shift = 0.25 * (beta.astype(f32) - run_mean.astype(f32) * gamma.astype(f32) * inv)
    scale2 = jnp.concatenate([scale, scale]).reshape(1, 2 * Cin)
    shift2 = jnp.concatenate([shift, shift]).reshape(1, 2 * Cin)

    # 1x1 conv weight, transposed and duplicated along K so the MXU contraction
    # also performs the horizontal tap sum.  (2*Cin, Cout), VMEM-resident.
    w_t = w_oihw.reshape(Cout, Cin).T.astype(mxu_dtype)
    w2 = jnp.concatenate([w_t, w_t], axis=0)

    # Free row-major view: pack the two horizontal taps along the channel dim.
    x_view = x_nhwc.reshape(N, H, Wo, 2 * Cin)

    target_in_bytes, vmem_limit = _vmem_budget()
    itemsize = jnp.dtype(x_nhwc.dtype).itemsize
    row_in_bytes = 2 * W * Cin * itemsize      # input bytes per pooled-output row
    nb, hr = _pick_tiling(N, Ho, row_in_bytes, target_in_bytes)
    grid = (N // nb, Ho // hr)

    cost = pl.CostEstimate(
        flops=2 * N * Ho * Wo * (2 * Cin) * Cout,
        transcendentals=0,
        bytes_accessed=(x_nhwc.size * itemsize
                        + w2.size * jnp.dtype(mxu_dtype).itemsize
                        + 4 * Cin * 4 * 2
                        + N * Ho * Wo * Cout * jnp.dtype(out_dtype).itemsize))

    out = pl.pallas_call(
        _transition_kernel,
        out_shape=jax.ShapeDtypeStruct((N, Ho, Wo, Cout), out_dtype),
        grid_spec=pltpu.PrefetchScalarGridSpec(
            num_scalar_prefetch=0,
            grid=grid,
            in_specs=[
                pl.BlockSpec((nb, 2 * hr, Wo, 2 * Cin), lambda bn, bh: (bn, bh, 0, 0)),
                pl.BlockSpec((1, 2 * Cin), lambda bn, bh: (0, 0)),
                pl.BlockSpec((1, 2 * Cin), lambda bn, bh: (0, 0)),
                pl.BlockSpec((2 * Cin, Cout), lambda bn, bh: (0, 0)),
            ],
            out_specs=pl.BlockSpec((nb, hr, Wo, Cout), lambda bn, bh: (bn, bh, 0, 0)),
        ),
        compiler_params=pltpu.CompilerParams(
            dimension_semantics=("parallel", "parallel"),
            vmem_limit_bytes=vmem_limit),
        cost_estimate=cost,
    )(x_view, scale2, shift2, w2)
    return out


def densenet_transition_block(x_nchw, gamma, beta, run_mean, run_var, w_oihw,
                              mxu_dtype=None, out_dtype=None):
    """NCHW interface matching the PyTorch module.  The two transposes here are
    the only extra HBM passes; channels-last pipelines should call
    densenet_transition_block_nhwc directly (zero layout passes)."""
    x_nhwc = jnp.transpose(x_nchw, (0, 2, 3, 1))
    out_nhwc = densenet_transition_block_nhwc(
        x_nhwc, gamma, beta, run_mean, run_var, w_oihw,
        mxu_dtype=mxu_dtype, out_dtype=out_dtype)
    return jnp.transpose(out_nhwc, (0, 3, 1, 2))


def _reference(x_nchw, gamma, beta, run_mean, run_var, w_oihw):
    """Plain-JAX reference matching PyTorch eval-mode forward."""
    xn = (x_nchw - run_mean[None, :, None, None]) * jax.lax.rsqrt(
        run_var[None, :, None, None] + BN_EPS)
    xn = xn * gamma[None, :, None, None] + beta[None, :, None, None]
    xr = jnp.maximum(xn, 0.0)
    y = jnp.einsum('nchw,oc->nohw', xr, w_oihw.reshape(w_oihw.shape[0], -1))
    N, Co, H, W = y.shape
    return y.reshape(N, Co, H // 2, 2, W // 2, 2).mean(axis=(3, 5))


if __name__ == "__main__":
    # Module config: in_planes=4, compression_reduction=0.5 -> out_planes=2
    N, Cin, H, W = 2, 4, 16, 16
    Cout = int(Cin * 0.5)

    key = jax.random.PRNGKey(0)
    k_x, k_w, k_g, k_b, k_m, k_v = jax.random.split(key, 6)

    x = jax.random.normal(k_x, (N, Cin, H, W), dtype=jnp.float32)
    # Conv2d(in, out, 1, bias=False) weight: (Cout, Cin, 1, 1)
    w_oihw = jax.random.normal(k_w, (Cout, Cin, 1, 1), dtype=jnp.float32) * 0.1
    # BatchNorm2d(in_planes) params and running stats (inference semantics)
    gamma = jax.random.normal(k_g, (Cin,), dtype=jnp.float32) * 0.1 + 1.0
    beta = jax.random.normal(k_b, (Cin,), dtype=jnp.float32) * 0.1
    run_mean = jax.random.normal(k_m, (Cin,), dtype=jnp.float32) * 0.1
    run_var = jax.random.uniform(k_v, (Cin,), dtype=jnp.float32,
                                 minval=0.5, maxval=1.5)

    out = densenet_transition_block(x, gamma, beta, run_mean, run_var, w_oihw)
    out = jax.block_until_ready(out)

    ref = _reference(x, gamma, beta, run_mean, run_var, w_oihw)
    assert out.shape == (N, Cout, H // 2, W // 2), out.shape
    assert jnp.allclose(out, ref, atol=1e-5, rtol=1e-5), "mismatch vs reference"

    print("KERNEL_OK")
</pallas_src>

<mosaic_0001>
module attributes {stable_mosaic.version = 11 : i64} {
  func.func @_transition_kernel(%arg0: i32, %arg1: i32, %arg2: memref<1x16x8x8xf32, #tpu.memory_space<vmem>>, %arg3: memref<1x8xf32, #tpu.memory_space<vmem>>, %arg4: memref<1x8xf32, #tpu.memory_space<vmem>>, %arg5: memref<8x2xf32, #tpu.memory_space<vmem>>, %arg6: memref<1x8x8x2xf32, #tpu.memory_space<vmem>>) attributes {dimension_semantics = [#tpu.dimension_semantics<parallel>, #tpu.dimension_semantics<parallel>], iteration_bounds = array<i64: 2, 1>, scalar_prefetch = 0 : i64, scratch_operands = 0 : i64, tpu.core_type = #tpu.core_type<tc>, window_params = [{transform_indices = @transform_0, window_bounds = array<i64: 1, 16, 8, 8>}, {pipeline_mode = #tpu.pipeline_mode<synchronous>, transform_indices = @transform_1, window_bounds = array<i64: 1, 8>}, {pipeline_mode = #tpu.pipeline_mode<synchronous>, transform_indices = @transform_2, window_bounds = array<i64: 1, 8>}, {pipeline_mode = #tpu.pipeline_mode<synchronous>, transform_indices = @transform_3, window_bounds = array<i64: 8, 2>}, {transform_indices = @transform_4, window_bounds = array<i64: 1, 8, 8, 2>}]} {
    %c0 = arith.constant 0 : index
    %c0_0 = arith.constant 0 : index
    %c0_1 = arith.constant 0 : index
    %c0_2 = arith.constant 0 : index
    %0 = vector.load %arg2[%c0, %c0_0, %c0_1, %c0_2] : memref<1x16x8x8xf32, #tpu.memory_space<vmem>>, vector<1x16x8x8xf32>
    %c0_3 = arith.constant 0 : index
    %c0_4 = arith.constant 0 : index
    %1 = vector.load %arg3[%c0_3, %c0_4] : memref<1x8xf32, #tpu.memory_space<vmem>>, vector<1x8xf32>
    %2 = vector.shape_cast %1 : vector<1x8xf32> to vector<1x1x1x8xf32>
    %3 = vector.broadcast %2 : vector<1x1x1x8xf32> to vector<1x16x8x8xf32>
    %4 = arith.mulf %0, %3 : vector<1x16x8x8xf32>
    %c0_5 = arith.constant 0 : index
    %c0_6 = arith.constant 0 : index
    %5 = vector.load %arg4[%c0_5, %c0_6] : memref<1x8xf32, #tpu.memory_space<vmem>>, vector<1x8xf32>
    %6 = vector.shape_cast %5 : vector<1x8xf32> to vector<1x1x1x8xf32>
    %7 = vector.broadcast %6 : vector<1x1x1x8xf32> to vector<1x16x8x8xf32>
    %8 = arith.addf %4, %7 : vector<1x16x8x8xf32>
    %cst = arith.constant 0.000000e+00 : f32
    %9 = vector.broadcast %cst : f32 to vector<1x16x8x8xf32>
    %10 = arith.maximumf %8, %9 : vector<1x16x8x8xf32>
    %11 = vector.shape_cast %10 : vector<1x16x8x8xf32> to vector<1x8x2x8x8xf32>
    %12 = vector.extract_strided_slice %11 {offsets = [0, 0, 0, 0, 0], sizes = [1, 8, 1, 8, 8], strides = [1, 1, 1, 1, 1]} : vector<1x8x2x8x8xf32> to vector<1x8x1x8x8xf32>
    %13 = vector.shape_cast %12 : vector<1x8x1x8x8xf32> to vector<1x8x8x8xf32>
    %14 = vector.extract_strided_slice %11 {offsets = [0, 0, 1, 0, 0], sizes = [1, 8, 1, 8, 8], strides = [1, 1, 1, 1, 1]} : vector<1x8x2x8x8xf32> to vector<1x8x1x8x8xf32>
    %15 = vector.shape_cast %14 : vector<1x8x1x8x8xf32> to vector<1x8x8x8xf32>
    %16 = arith.addf %13, %15 : vector<1x8x8x8xf32>
    %17 = vector.shape_cast %16 : vector<1x8x8x8xf32> to vector<64x8xf32>
    %c0_7 = arith.constant 0 : index
    %c0_8 = arith.constant 0 : index
    %18 = vector.load %arg5[%c0_7, %c0_8] : memref<8x2xf32, #tpu.memory_space<vmem>>, vector<8x2xf32>
    %cst_9 = arith.constant dense<0.000000e+00> : vector<64x2xf32>
    %19 = tpu.matmul %17, %18, %cst_9 {dimension_numbers = #tpu.dot_dimension_numbers<[1], [0], [0], [1], [0, 0, 1, 1], [], []>} : vector<64x8xf32>, vector<8x2xf32>, vector<64x2xf32> -> vector<64x2xf32>
    %20 = vector.shape_cast %19 : vector<64x2xf32> to vector<1x8x8x2xf32>
    %c0_10 = arith.constant 0 : index
    %c0_11 = arith.constant 0 : index
    %c0_12 = arith.constant 0 : index
    %c0_13 = arith.constant 0 : index
    %21 = vector.load %arg6[%c0_10, %c0_11, %c0_12, %c0_13] : memref<1x8x8x2xf32, #tpu.memory_space<vmem>>, vector<1x8x8x2xf32>
    tpu.vector_store %arg6[%c0_10, %c0_11, %c0_12, %c0_13], %20 {strides = array<i32>} : memref<1x8x8x2xf32, #tpu.memory_space<vmem>>, vector<1x8x8x2xf32>,
    return
  }
  func.func @transform_0(%arg0: i32, %arg1: i32) -> (i32, i32, i32, i32) {
    %c0_i32 = arith.constant 0 : i32
    %c0_i32_0 = arith.constant 0 : i32
    %c0_i32_1 = arith.constant 0 : i32
    return %arg0, %arg1, %c0_i32, %c0_i32_0 : i32, i32, i32, i32
  }
  func.func @transform_1(%arg0: i32, %arg1: i32) -> (i32, i32) {
    %c0_i32 = arith.constant 0 : i32
    %c0_i32_0 = arith.constant 0 : i32
    %c0_i32_1 = arith.constant 0 : i32
    return %c0_i32, %c0_i32_0 : i32, i32
  }
  func.func @transform_2(%arg0: i32, %arg1: i32) -> (i32, i32) {
    %c0_i32 = arith.constant 0 : i32
    %c0_i32_0 = arith.constant 0 : i32
    %c0_i32_1 = arith.constant 0 : i32
    return %c0_i32, %c0_i32_0 : i32, i32
  }
  func.func @transform_3(%arg0: i32, %arg1: i32) -> (i32, i32) {
    %c0_i32 = arith.constant 0 : i32
    %c0_i32_0 = arith.constant 0 : i32
    %c0_i32_1 = arith.constant 0 : i32
    return %c0_i32, %c0_i32_0 : i32, i32
  }
  func.func @transform_4(%arg0: i32, %arg1: i32) -> (i32, i32, i32, i32) {
    %c0_i32 = arith.constant 0 : i32
    %c0_i32_0 = arith.constant 0 : i32
    %c0_i32_1 = arith.constant 0 : i32
    return %arg0, %arg1, %c0_i32, %c0_i32_0 : i32, i32, i32, i32
  }
}

</mosaic_0001>

<llo_original>
// kernel: tpu_custom_call.1
$region0: #{tpu_custom_call.1}
  #allocation0 [shape = 'u32[]', space=smem, size = 0x4, offset = 0x4, fixed_abs, tag = 'smem constant byte address 0x4 - core index']
  #allocation1 [shape = 'u32[144,128]{1,0:T(1,128)}', space=vmem, size = 0x12000, scoped, tag = 'internal scratch']
  %s0 = inlined_call_operand.vmem [shape: f32[2,16,8,8], index: 0, kind: input, shape index: {}]
  %s1 = inlined_call_operand.vmem [shape: f32[1,8], index: 1, kind: input, shape index: {}]
  %s2 = inlined_call_operand.vmem [shape: f32[1,8], index: 2, kind: input, shape index: {}]
  %s3 = inlined_call_operand.vmem [shape: f32[8,2], index: 3, kind: input, shape index: {}]
  %s4 = inlined_call_operand.vmem [shape: f32[2,8,8,2], index: 4, kind: output, shape index: {}]
  %s5 = sld [smem:[#allocation0]]
  $region49: #{tpu_custom_call.1} parent=0
    _
  %s7 = ssub.s32 1, %s5
  %s8 = scalar_select 0, %s7, %s5
  loop: start=0, step=1, limit=4
  $region2: #{tpu_custom_call.1} parent=0 // loop_pre_header
    _
  $region3: #{tpu_custom_call.1} parent=0 // loop_header
    %s10 = sphi 0, %s14
    %p11 = scmp.ge.s32.totalorder %s10, 4
    %s17 = sphi 0, %s29
    %s18 = sphi 0, %s25
    %s19 = sphi 0, %s17
    %s20 = sphi 0, %s18
    %s21 = sphi 0, %s19
    %s22 = sphi 0, %s20
    %s34 = sphi 0, %s36
    %s37 = sphi 0, %s34
    %s38 = sphi 0, %s37
    %s54 = sphi 0, %s38
    %s58 = sphi 0, %s58
    %s60 = sphi 0, %s58
    %s61 = sphi 0, %s60
    %s75 = sphi 0, %s61
    %s79 = sphi 0, %s79
    %s81 = sphi 0, %s79
    %s82 = sphi 0, %s81
    %s96 = sphi 0, %s82
    %s100 = sphi 0, %s100
    %s102 = sphi 0, %s100
    %s103 = sphi 0, %s102
    %s117 = sphi 0, %s103
    %s125 = sphi 0, %s127
    %s128 = sphi 0, %s125
    %s129 = sphi 0, %s128
    %s145 = sphi 0, %s129
  $region4: #{tpu_custom_call.1} parent=0 // loop_header_branch
    %13 = sbr.rel (%p11) target = $region8
  $region5: #{tpu_custom_call.1} parent=0 // loop_body
    %s15 = ssub.s32 %s10, 1
    %s16 = ssub.s32 %s10, 2
    %s23 = sadd.s32 1, %s18
    %p24 = scmp.ge.s32.totalorder %s23, 1
    %s25 = scalar_select %p24, 0, %s23
    %s26 = sadd.s32 1, %s17
    %s27 = scalar_select %p24, %s26, %s17
    %p28 = scmp.ge.s32.totalorder %s27, 2
    %s29 = scalar_select %p28, 0, %s27
    %s30 = ssub.s32 %s17, %s29
    %s31 = ssub.s32 %s18, %s25
    %s32 = sor.u32 %s30, %s31
    %p33 = scmp.eq.s32.totalorder %s32, 0
    %s35 = sadd.s32 %s34, 1
    %s36 = scalar_select %p33, %s34, %s35
    %p39 = pneg %p33
    %p40 = scmp.eq.s32.totalorder %s10, 1
    %p41 = por %p39, %p40
    %p42 = scmp.ne.s32.totalorder %s34, %s37
    %p43 = scmp.eq.s32.totalorder %s10, 0
    %p44 = por %p42, %p43
    %p45 = scmp.ne.s32.totalorder %s34, %s37
    %p46 = scmp.eq.s32.totalorder %s15, 1
    %p47 = por %p45, %p46
    %p48 = scmp.ne.s32.totalorder %s37, %s38
    %p49 = scmp.eq.s32.totalorder %s15, 0
    %p50 = por %p48, %p49
    %p51 = scmp.ne.s32.totalorder %s37, %s38
    %p52 = scmp.eq.s32.totalorder %s16, 1
    %p53 = por %p51, %p52
    %p55 = scmp.ne.s32.totalorder %s38, %s54
    %p56 = scmp.eq.s32.totalorder %s16, 0
    %p57 = por %p55, %p56
    %s59 = sadd.s32 %s58, 1
    %p62 = scmp.eq.s32.totalorder %s10, 1
    %p63 = scmp.ne.s32.totalorder %s58, %s60
    %p64 = scmp.eq.s32.totalorder %s10, 0
    %p65 = por %p63, %p64
    %p66 = scmp.ne.s32.totalorder %s58, %s60
    %p67 = scmp.eq.s32.totalorder %s15, 1
    %p68 = por %p66, %p67
    %p69 = scmp.ne.s32.totalorder %s60, %s61
    %p70 = scmp.eq.s32.totalorder %s15, 0
    %p71 = por %p69, %p70
    %p72 = scmp.ne.s32.totalorder %s60, %s61
    %p73 = scmp.eq.s32.totalorder %s16, 1
    %p74 = por %p72, %p73
    %p76 = scmp.ne.s32.totalorder %s61, %s75
    %p77 = scmp.eq.s32.totalorder %s16, 0
    %p78 = por %p76, %p77
    %s80 = sadd.s32 %s79, 1
    %p83 = scmp.eq.s32.totalorder %s10, 1
    %p84 = scmp.ne.s32.totalorder %s79, %s81
    %p85 = scmp.eq.s32.totalorder %s10, 0
    %p86 = por %p84, %p85
    %p87 = scmp.ne.s32.totalorder %s79, %s81
    %p88 = scmp.eq.s32.totalorder %s15, 1
    %p89 = por %p87, %p88
    %p90 = scmp.ne.s32.totalorder %s81, %s82
    %p91 = scmp.eq.s32.totalorder %s15, 0
    %p92 = por %p90, %p91
    %p93 = scmp.ne.s32.totalorder %s81, %s82
    %p94 = scmp.eq.s32.totalorder %s16, 1
    %p95 = por %p93, %p94
    %p97 = scmp.ne.s32.totalorder %s82, %s96
    %p98 = scmp.eq.s32.totalorder %s16, 0
    %p99 = por %p97, %p98
    %s101 = sadd.s32 %s100, 1
    %p104 = scmp.eq.s32.totalorder %s10, 1
    %p105 = scmp.ne.s32.totalorder %s100, %s102
    %p106 = scmp.eq.s32.totalorder %s10, 0
    %p107 = por %p105, %p106
    %p108 = scmp.ne.s32.totalorder %s100, %s102
    %p109 = scmp.eq.s32.totalorder %s15, 1
    %p110 = por %p108, %p109
    %p111 = scmp.ne.s32.totalorder %s102, %s103
    %p112 = scmp.eq.s32.totalorder %s15, 0
    %p113 = por %p111, %p112
    %p114 = scmp.ne.s32.totalorder %s102, %s103
    %p115 = scmp.eq.s32.totalorder %s16, 1
    %p116 = por %p114, %p115
    %p118 = scmp.ne.s32.totalorder %s103, %s117
    %p119 = scmp.eq.s32.totalorder %s16, 0
    %p120 = por %p118, %p119
    %s121 = ssub.s32 %s17, %s29
    %s122 = ssub.s32 %s18, %s25
    %s123 = sor.u32 %s121, %s122
    %p124 = scmp.eq.s32.totalorder %s123, 0
    %s126 = sadd.s32 %s125, 1
    %s127 = scalar_select %p124, %s125, %s126
    %p130 = pneg %p124
    %p131 = scmp.eq.s32.totalorder %s10, 1
    %p132 = por %p130, %p131
    %p133 = scmp.ne.s32.totalorder %s125, %s128
    %p134 = scmp.eq.s32.totalorder %s10, 0
    %p135 = por %p133, %p134
    %p136 = scmp.ne.s32.totalorder %s125, %s128
    %p137 = scmp.eq.s32.totalorder %s15, 1
    %p138 = por %p136, %p137
    %p139 = scmp.ne.s32.totalorder %s128, %s129
    %p140 = scmp.eq.s32.totalorder %s15, 0
    %p141 = por %p139, %p140
    %p142 = scmp.ne.s32.totalorder %s128, %s129
    %p143 = scmp.eq.s32.totalorder %s16, 1
    %p144 = por %p142, %p143
    %p146 = scmp.ne.s32.totalorder %s129, %s145
    %p147 = scmp.eq.s32.totalorder %s16, 0
    %p148 = por %p146, %p147
    %p149 = scmp.le.s32.totalorder 1, %s10
    %p150 = scmp.lt.s32.totalorder %s10, 3
    %p151 = pnand %p149, %p150
    %p152 = pneg %p151
    // Predicated region
    $region9: #{tpu_custom_call.1} parent=5 // pred_check
      _
    $region10: #{tpu_custom_call.1} parent=5 // pred_check_branch
      %154 = sbr.rel (%p151) target = $region12
    $region11: #{tpu_custom_call.1} parent=5 // pred_region
      %s155 = ssub.s32 %s10, 1
      // Predicated region
      $region13: #{tpu_custom_call.1} parent=11 // pred_check
        %p156 = pneg %p71
      $region14: #{tpu_custom_call.1} parent=11 // pred_check_branch
        %158 = sbr.rel (%p156) target = $region16
      $region15: #{tpu_custom_call.1} parent=11 // pred_region
        _
      $region16: #{tpu_custom_call.1} parent=11 // pred_fallthru
        _
      // Predicated region
      $region17: #{tpu_custom_call.1} parent=11 // pred_check
        %p159 = pneg %p92
      $region18: #{tpu_custom_call.1} parent=11 // pred_check_branch
        %161 = sbr.rel (%p159) target = $region20
      $region19: #{tpu_custom_call.1} parent=11 // pred_region
        _
      $region20: #{tpu_custom_call.1} parent=11 // pred_fallthru
        _
      // Predicated region
      $region21: #{tpu_custom_call.1} parent=11 // pred_check
        %p162 = pneg %p113
      $region22: #{tpu_custom_call.1} parent=11 // pred_check_branch
        %164 = sbr.rel (%p162) target = $region24
      $region23: #{tpu_custom_call.1} parent=11 // pred_region
        _
      $region24: #{tpu_custom_call.1} parent=11 // pred_fallthru
        _
    $region12: #{tpu_custom_call.1} parent=5 // pred_fallthru
      _
    %p165 = scmp.lt.s32.totalorder %s10, 2
    // Predicated region
    $region25: #{tpu_custom_call.1} parent=5 // pred_check
      %p166 = pneg %p165
    $region26: #{tpu_custom_call.1} parent=5 // pred_check_branch
      %168 = sbr.rel (%p166) target = $region28
    $region27: #{tpu_custom_call.1} parent=5 // pred_region
      // Predicated region
      $region29: #{tpu_custom_call.1} parent=27 // pred_check
        %p169 = pneg %p44
      $region30: #{tpu_custom_call.1} parent=27 // pred_check_branch
        %171 = sbr.rel (%p169) target = $region32
      $region31: #{tpu_custom_call.1} parent=27 // pred_region
        %s172 = smul.u32 16, %s18
        %p173 = scmp.lt.s32.totalorder %s17, 1
        %s174 = scalar_select %p173, %s17, 1
        %p175 = scmp.lt.s32.totalorder %s172, 15
        %s176 = scalar_select %p175, %s172, 15
        %s177 = smul.addr %s174, 16
        %s178 = sadd.s32 %s176, %s177
        %s179 = smul.addr %s178, 8
        %s180 = scalar_lea.vmem %s0, %s179
        %s181 = smul.u32 16, %s18
      $region32: #{tpu_custom_call.1} parent=27 // pred_fallthru
        _
    $region28: #{tpu_custom_call.1} parent=5 // pred_fallthru
      _
    %p182 = scmp.le.s32.totalorder 1, %s10
    %p183 = scmp.lt.s32.totalorder %s10, 3
    %p184 = pnand %p182, %p183
    %p185 = pneg %p184
    // Predicated region
    $region33: #{tpu_custom_call.1} parent=5 // pred_check
      _
    $region34: #{tpu_custom_call.1} parent=5 // pred_check_branch
      %187 = sbr.rel (%p184) target = $region36
    $region35: #{tpu_custom_call.1} parent=5 // pred_region
      %s188 = ssub.s32 %s10, 1
      %s189 = smul.u32 16, %s20
      %p190 = scmp.lt.s32.totalorder %s19, 1
      %s191 = scalar_select %p190, %s19, 1
      %p192 = scmp.lt.s32.totalorder %s189, 15
      %s193 = scalar_select %p192, %s189, 15
      %s194 = smul.addr %s191, 16
      %s195 = sadd.s32 %s193, %s194
      %s196 = smul.addr %s195, 8
      %s197 = scalar_lea.vmem %s0, %s196
      %p198 = pneg %p50
      %p199 = pneg %p47
      %p200 = pneg %p71
      %p201 = pneg %p68
      %p202 = pneg %p92
      %p203 = pneg %p89
      %p204 = pneg %p113
      %p205 = pneg %p110
      %p206 = pneg %p141
      %p207 = pneg %p138
      %s208 = smul.u32 8, %s20
      %p209 = scmp.lt.s32.totalorder %s19, 1
      %s210 = scalar_select %p209, %s19, 1
      %p211 = scmp.lt.s32.totalorder %s208, 7
      %s212 = scalar_select %p211, %s208, 7
      %s213 = smul.addr %s210, 8
      %s214 = sadd.s32 %s212, %s213
      %s215 = smul.addr %s214, 8
      %s216 = scalar_lea.vmem %s4, %s215
      %s217 = smul.u32 16, %s20
      %p218 = scmp.lt.s32.totalorder %s19, 1
      %s219 = scalar_select %p218, %s19, 1
      %p220 = scmp.lt.s32.totalorder %s217, 15
      %s221 = scalar_select %p220, %s217, 15
      %s222 = smul.addr %s219, 16
      %s223 = sadd.s32 %s221, %s222
      %s224 = smul.addr %s223, 8
      %s225 = scalar_lea.vmem %s0, %s224
      %s226 = smul.u32 16, %s20
      %s227 = smul.u32 8, %s20
      %p228 = scmp.lt.s32.totalorder %s19, 1
      %s229 = scalar_select %p228, %s19, 1
      %p230 = scmp.lt.s32.totalorder %s227, 7
      %s231 = scalar_select %p230, %s227, 7
      %s232 = smul.addr %s229, 8
      %s233 = sadd.s32 %s231, %s232
      %s234 = smul.addr %s233, 8
      %s235 = scalar_lea.vmem %s4, %s234
      %s236 = smul.u32 8, %s20
      %v237 = vld [vmem:[%s225] sm:$0xff]
      %v238 = vld [vmem:[%s225 + $0x8] sm:$0xff]
      %v239 = vld [vmem:[%s225 + $0x10] sm:$0xff]
      %v240 = vld [vmem:[%s225 + $0x18] sm:$0xff]
      %v241 = vld [vmem:[%s225 + $0x20] sm:$0xff]
      %v242 = vld [vmem:[%s225 + $0x28] sm:$0xff]
      %v243 = vld [vmem:[%s225 + $0x30] sm:$0xff]
      %v244 = vld [vmem:[%s225 + $0x38] sm:$0xff]
      %v245 = vld [vmem:[%s225 + $0x40] sm:$0xff]
      %v246 = vld [vmem:[%s225 + $0x48] sm:$0xff]
      %v247 = vld [vmem:[%s225 + $0x50] sm:$0xff]
      %v248 = vld [vmem:[%s225 + $0x58] sm:$0xff]
      %v249 = vld [vmem:[%s225 + $0x60] sm:$0xff]
      %v250 = vld [vmem:[%s225 + $0x68] sm:$0xff]
      %v251 = vld [vmem:[%s225 + $0x70] sm:$0xff]
      %v252 = vld [vmem:[%s225 + $0x78] sm:$0xff]
      %v253 = vld [vmem:[%s1] sm:$0x1]
      %v255 = vlaneseq
      %v256 = vshrl.u32 %v255, 7
      %v257 = vsub.s32 0, %v256
      %v258 = vrot.slane %v253, %v257
      %v260 = vmul.f32 %v237, %v258
      %v261 = vmul.f32 %v238, %v258
      %v262 = vmul.f32 %v239, %v258
      %v263 = vmul.f32 %v240, %v258
      %v264 = vmul.f32 %v241, %v258
      %v265 = vmul.f32 %v242, %v258
      %v266 = vmul.f32 %v243, %v258
      %v267 = vmul.f32 %v244, %v258
      %v268 = vmul.f32 %v245, %v258
      %v269 = vmul.f32 %v246, %v258
      %v270 = vmul.f32 %v247, %v258
      %v271 = vmul.f32 %v248, %v258
      %v272 = vmul.f32 %v249, %v258
      %v273 = vmul.f32 %v250, %v258
      %v274 = vmul.f32 %v251, %v258
      %v275 = vmul.f32 %v252, %v258
      %v276 = vld [vmem:[%s2] sm:$0x1]
      %v278 = vlaneseq
      %v279 = vshrl.u32 %v278, 7
      %v280 = vsub.s32 0, %v279
      %v281 = vrot.slane %v276, %v280
      %v283 = vadd.f32 %v260, %v281
      %v284 = vadd.f32 %v261, %v281
      %v285 = vadd.f32 %v262, %v281
      %v286 = vadd.f32 %v263, %v281
      %v287 = vadd.f32 %v264, %v281
      %v288 = vadd.f32 %v265, %v281
      %v289 = vadd.f32 %v266, %v281
      %v290 = vadd.f32 %v267, %v281
      %v291 = vadd.f32 %v268, %v281
      %v292 = vadd.f32 %v269, %v281
      %v293 = vadd.f32 %v270, %v281
      %v294 = vadd.f32 %v271, %v281
      %v295 = vadd.f32 %v272, %v281
      %v296 = vadd.f32 %v273, %v281
      %v297 = vadd.f32 %v274, %v281
      %v298 = vadd.f32 %v275, %v281
      %v299 = vmax.f32 %v283, 0.0
      %v300 = vmax.f32 %v284, 0.0
      %v301 = vmax.f32 %v285, 0.0
      %v302 = vmax.f32 %v286, 0.0
      %v303 = vmax.f32 %v287, 0.0
      %v304 = vmax.f32 %v288, 0.0
      %v305 = vmax.f32 %v289, 0.0
      %v306 = vmax.f32 %v290, 0.0
      %v307 = vmax.f32 %v291, 0.0
      %v308 = vmax.f32 %v292, 0.0
      %v309 = vmax.f32 %v293, 0.0
      %v310 = vmax.f32 %v294, 0.0
      %v311 = vmax.f32 %v295, 0.0
      %v312 = vmax.f32 %v296, 0.0
      %v313 = vmax.f32 %v297, 0.0
      %v314 = vmax.f32 %v298, 0.0
      %v315 = vadd.f32 %v299, %v300
      %v316 = vadd.f32 %v301, %v302
      %v317 = vadd.f32 %v303, %v304
      %v318 = vadd.f32 %v305, %v306
      %v319 = vadd.f32 %v307, %v308
      %v320 = vadd.f32 %v309, %v310
      %v321 = vadd.f32 %v311, %v312
      %v322 = vadd.f32 %v313, %v314
      %v323 = vld [vmem:[%s3] sm:$0xff]
      %vm324 = vcmask 64512
      %v326 = vsel %vm324, %v315, 0
      %v329 = vsel %vm324, %v316, 0
      %v332 = vsel %vm324, %v317, 0
      %v335 = vsel %vm324, %v318, 0
      %v338 = vsel %vm324, %v319, 0
      %v341 = vsel %vm324, %v320, 0
      %v344 = vsel %vm324, %v321, 0
      %v347 = vsel %vm324, %v322, 0
      %349 = vmatprep.subr.mxu0 0.0
      %350 = vmatpush1.msra.mxu0 %v323
      %351 = vmatprep.subr.mxu0 0.0
      %352 = vmatpush1.msra.mxu0 0.0
      %353 = vmatprep.subr.mxu0 0.0
      %354 = vmatpush1.msra.mxu0 0.0
      %355 = vmatprep.subr.mxu0 0.0
      %356 = vmatpush1.msra.mxu0 0.0
      %357 = vmatprep.subr.mxu0 0.0
      %358 = vmatpush1.msra.mxu0 0.0
      %359 = vmatprep.subr.mxu0 0.0
      %360 = vmatpush1.msra.mxu0 0.0
      %361 = vmatprep.subr.mxu0 0.0
      %362 = vmatpush1.msra.mxu0 0.0
      %363 = vmatprep.subr.mxu0 0.0
      %364 = vmatpush1.msra.mxu0 0.0
      %365 = vmatprep.subr.mxu0 0.0
      %366 = vmatpush1.msra.mxu0 0.0
      %367 = vmatprep.subr.mxu0 0.0
      %368 = vmatpush1.msra.mxu0 0.0
      %369 = vmatprep.subr.mxu0 0.0
      %370 = vmatpush1.msra.mxu0 0.0
      %371 = vmatprep.subr.mxu0 0.0
      %372 = vmatpush1.msra.mxu0 0.0
      %373 = vmatprep.subr.mxu0 0.0
      %374 = vmatpush1.msra.mxu0 0.0
      %375 = vmatprep.subr.mxu0 0.0
      %376 = vmatpush1.msra.mxu0 0.0
      %377 = vmatprep.subr.mxu0 0.0
      %378 = vmatpush1.msra.mxu0 0.0
      %379 = vmatprep.subr.mxu0 0.0
      %380 = vmatpush1.msra.mxu0 0.0
      %381 = vmatprep.subr.mxu0 0.0
      %382 = vmatpush1.msra.mxu0 0.0
      %383 = vmatprep.subr.mxu0 0.0
      %384 = vmatpush1.msra.mxu0 0.0
      %385 = vmatprep.subr.mxu0 0.0
      %386 = vmatpush1.msra.mxu0 0.0
      %387 = vmatprep.subr.mxu0 0.0
      %388 = vmatpush1.msra.mxu0 0.0
      %389 = vmatprep.subr.mxu0 0.0
      %390 = vmatpush1.msra.mxu0 0.0
      %391 = vmatprep.subr.mxu0 0.0
      %392 = vmatpush1.msra.mxu0 0.0
      %393 = vmatprep.subr.mxu0 0.0
      %394 = vmatpush1.msra.mxu0 0.0
      %395 = vmatprep.subr.mxu0 0.0
      %396 = vmatpush1.msra.mxu0 0.0
      %397 = vmatprep.subr.mxu0 0.0
      %398 = vmatpush1.msra.mxu0 0.0
      %399 = vmatprep.subr.mxu0 0.0
      %400 = vmatpush1.msra.mxu0 0.0
      %401 = vmatprep.subr.mxu0 0.0
      %402 = vmatpush1.msra.mxu0 0.0
      %403 = vmatprep.subr.mxu0 0.0
      %404 = vmatpush1.msra.mxu0 0.0
      %405 = vmatprep.subr.mxu0 0.0
      %406 = vmatpush1.msra.mxu0 0.0
      %407 = vmatprep.subr.mxu0 0.0
      %408 = vmatpush1.msra.mxu0 0.0
      %409 = vmatprep.subr.mxu0 0.0
      %410 = vmatpush1.msra.mxu0 0.0
      %411 = vmatprep.subr.mxu0 0.0
      %412 = vmatpush1.msra.mxu0 0.0
      %413 = vmatprep.mubr.f32.mxu0 0.0
      %414 = vmatmul.mubr.f32.gmra.mrb[0].mxu0 %v326
      %v415 = vpop.f32.mrb[0].mxu0
      %v416 = vadd.f32 0.0, %v415
      %v417 = vpop.f32.mrb[0].mxu0
      %418 = vmatprep.mubr.f32.mxu0 0.0
      %419 = vmatmul.mubr.f32.gmra.mrb[0].mxu0 %v329
      %v420 = vpop.f32.mrb[0].mxu0
      %v421 = vadd.f32 0.0, %v420
      %v422 = vpop.f32.mrb[0].mxu0
      %423 = vmatprep.mubr.f32.mxu0 0.0
      %424 = vmatmul.mubr.f32.gmra.mrb[0].mxu0 %v332
      %v425 = vpop.f32.mrb[0].mxu0
      %v426 = vadd.f32 0.0, %v425
      %v427 = vpop.f32.mrb[0].mxu0
      %428 = vmatprep.mubr.f32.mxu0 0.0
      %429 = vmatmul.mubr.f32.gmra.mrb[0].mxu0 %v335
      %v430 = vpop.f32.mrb[0].mxu0
      %v431 = vadd.f32 0.0, %v430
      %v432 = vpop.f32.mrb[0].mxu0
      %433 = vmatprep.mubr.f32.mxu0 0.0
      %434 = vmatmul.mubr.f32.gmra.mrb[0].mxu0 %v338
      %v435 = vpop.f32.mrb[0].mxu0
      %v436 = vadd.f32 0.0, %v435
      %v437 = vpop.f32.mrb[0].mxu0
      %438 = vmatprep.mubr.f32.mxu0 0.0
      %439 = vmatmul.mubr.f32.gmra.mrb[0].mxu0 %v341
      %v440 = vpop.f32.mrb[0].mxu0
      %v441 = vadd.f32 0.0, %v440
      %v442 = vpop.f32.mrb[0].mxu0
      %443 = vmatprep.mubr.f32.mxu0 0.0
      %444 = vmatmul.mubr.f32.gmra.mrb[0].mxu0 %v344
      %v445 = vpop.f32.mrb[0].mxu0
      %v446 = vadd.f32 0.0, %v445
      %v447 = vpop.f32.mrb[0].mxu0
      %448 = vmatprep.mubr.f32.mxu0 0.0
      %449 = vmatmul.mubr.f32.gmra.mrb[0].mxu0 %v347
      %v450 = vpop.f32.mrb[0].mxu0
      %v451 = vadd.f32 0.0, %v450
      %v452 = vpop.f32.mrb[0].mxu0
      %453 = vdwg.mxu0
      %vm454 = vcmask 15360
      %455 = vst.msk [vmem:[%s235] sm:$0xff] %vm454, %v416
      %456 = vst.msk [vmem:[%s235 + $0x8] sm:$0xff] %vm454, %v421
      %457 = vst.msk [vmem:[%s235 + $0x10] sm:$0xff] %vm454, %v426
      %458 = vst.msk [vmem:[%s235 + $0x18] sm:$0xff] %vm454, %v431
      %459 = vst.msk [vmem:[%s235 + $0x20] sm:$0xff] %vm454, %v436
      %460 = vst.msk [vmem:[%s235 + $0x28] sm:$0xff] %vm454, %v441
      %461 = vst.msk [vmem:[%s235 + $0x30] sm:$0xff] %vm454, %v446
      %462 = vst.msk [vmem:[%s235 + $0x38] sm:$0xff] %vm454, %v451
      %s463 = smul.u32 8, %s20
      %p464 = scmp.lt.s32.totalorder %s19, 1
      %s465 = scalar_select %p464, %s19, 1
      %p466 = scmp.lt.s32.totalorder %s463, 7
      %s467 = scalar_select %p466, %s463, 7
      %s468 = smul.addr %s465, 8
      %s469 = sadd.s32 %s467, %s468
      %s470 = smul.addr %s469, 8
      %s471 = scalar_lea.vmem %s4, %s470
      // Predicated region
      $region37: #{tpu_custom_call.1} parent=35 // pred_check
        %p472 = pneg %p138
      $region38: #{tpu_custom_call.1} parent=35 // pred_check_branch
        %474 = sbr.rel (%p472) target = $region40
      $region39: #{tpu_custom_call.1} parent=35 // pred_region
        %s475 = smul.u32 8, %s20
      $region40: #{tpu_custom_call.1} parent=35 // pred_fallthru
        _
    $region36: #{tpu_custom_call.1} parent=5 // pred_fallthru
      _
    %p476 = scmp.le.s32.totalorder 2, %s10
    // Predicated region
    $region41: #{tpu_custom_call.1} parent=5 // pred_check
      %p477 = pneg %p476
    $region42: #{tpu_custom_call.1} parent=5 // pred_check_branch
      %479 = sbr.rel (%p477) target = $region44
    $region43: #{tpu_custom_call.1} parent=5 // pred_region
      %s480 = ssub.s32 %s10, 2
      // Predicated region
      $region45: #{tpu_custom_call.1} parent=43 // pred_check
        %p481 = pneg %p144
      $region46: #{tpu_custom_call.1} parent=43 // pred_check_branch
        %483 = sbr.rel (%p481) target = $region48
      $region47: #{tpu_custom_call.1} parent=43 // pred_region
        %s484 = smul.u32 8, %s22
        %p485 = scmp.lt.s32.totalorder %s21, 1
        %s486 = scalar_select %p485, %s21, 1
        %p487 = scmp.lt.s32.totalorder %s484, 7
        %s488 = scalar_select %p487, %s484, 7
        %s489 = smul.addr %s486, 8
        %s490 = sadd.s32 %s488, %s489
        %s491 = smul.addr %s490, 8
        %s492 = scalar_lea.vmem %s4, %s491
      $region48: #{tpu_custom_call.1} parent=43 // pred_fallthru
        _
    $region44: #{tpu_custom_call.1} parent=5 // pred_fallthru
      _
  $region6: #{tpu_custom_call.1} parent=0 // loop_footer
    %s14 = sadd.s32 1, %s10
  $region7: #{tpu_custom_call.1} parent=0 // loop_footer_branch
    %9 = sbr.rel target = $region3
  $region8: #{tpu_custom_call.1} parent=0 // loop_exit
    _

</llo_original>
